<compile_context>
chip_gen: v6e
topology: v6e:2x2x1
jax: 0.10.0
libtpu: 0.0.40
codegen_flags: <defaults>
</compile_context>

<pallas_src>
import functools

import jax
import jax.numpy as jnp
from jax.experimental import pallas as pl
from jax.experimental.pallas import tpu as pltpu


def _round_up(x, m):
    return ((x + m - 1) // m) * m


def _choose_tiling(n_nodes, hidden, b_pad, itemsize):
    """Pick node tile size + scoped-VMEM limit from the shapes.

    Budget targets <= ~40 MiB so the kernel fits every generation
    (v7x: 64 MiB physical per TensorCore; v5e/v6e: 128 MiB).
    """
    lane_h = _round_up(hidden, 128)                  # VMEM lane padding of one x row
    row_align = 8 if itemsize >= 4 else (16 if itemsize == 2 else 32)
    budget = 40 * 1024 * 1024
    pooled_bytes = 2 * b_pad * lane_h * 4            # resident f32 output block (x2)
    per_row = lane_h * itemsize
    max_rows = max(row_align, (budget - pooled_bytes) // (2 * per_row))
    if n_nodes <= max_rows:
        # Whole node stream fits: one slab, one grid step.
        tile_n = _round_up(n_nodes, row_align)
    else:
        # Multi-slab: keep the id-tile lane dim 128-aligned and rows 8/16-aligned.
        tile_n = max(128, (max_rows // 128) * 128)
    num_tiles = pl.cdiv(n_nodes, tile_n)
    needed = (2 * tile_n * per_row                        # x double buffer
              + pooled_bytes                              # pooled accumulator/output
              + 2 * 8 * _round_up(tile_n, 128) * 4)       # graph-id double buffer
    vmem_limit = int(max(needed + (4 << 20), 16 << 20))
    return tile_n, num_tiles, vmem_limit


def _segment_sum_kernel(batch_ref, x_ref, pooled_ref, *, n_nodes):
    """Grid step n: pooled[b, :] += sum of x rows in this slab with graph id b."""
    n = pl.program_id(0)
    tile_n = x_ref.shape[0]
    b_pad = pooled_ref.shape[0]

    @pl.when(n == 0)
    def _():
        pooled_ref[...] = jnp.zeros_like(pooled_ref)

    x_blk = x_ref[...]
    if n_nodes % tile_n != 0:
        # Ragged last slab: rows past n_nodes hold undefined data after the DMA;
        # zero them (select, not multiply) so NaN/Inf garbage cannot leak in.
        row = jax.lax.broadcasted_iota(jnp.int32, x_blk.shape, 0)
        x_blk = jnp.where(row + n * tile_n < n_nodes, x_blk, 0)

    seg = batch_ref[...]                                            # (1, tile_n) int32
    gid = jax.lax.broadcasted_iota(jnp.int32, (b_pad, tile_n), 0)   # graph-row index
    onehot = (gid == seg).astype(x_blk.dtype)                       # padded ids=-1 -> zero column

    # scatter_sum(x, batch, dim=0) == onehot @ x, accumulated in f32 on the MXU.
    # TODO(synk): per-operand precision ((DEFAULT, HIGHEST)) would cut MXU passes
    # ~2-3x once asymmetric dot precision lowers in Mosaic.
    prec = (jax.lax.Precision.HIGHEST if x_blk.dtype == jnp.float32
            else jax.lax.Precision.DEFAULT)
    pooled_ref[...] += jax.lax.dot_general(
        onehot, x_blk,
        dimension_numbers=(((1,), (0,)), ((), ())),
        preferred_element_type=jnp.float32,
        precision=prec,
    )


def _linear_kernel(pooled_ref, w_ref, b_ref, o_ref):
    """One output-column tile of pooled @ W.T + b (W kept in PyTorch [out, in] layout)."""
    w = w_ref[...].astype(jnp.float32)      # no-op for f32 weights
    out = jax.lax.dot_general(
        pooled_ref[...], w,
        dimension_numbers=(((1,), (1,)), ((), ())),   # transpose folded into MXU
        preferred_element_type=jnp.float32,
        precision=jax.lax.Precision.HIGHEST,
    ) + b_ref[...]
    o_ref[...] = out.astype(o_ref.dtype)


@functools.partial(jax.jit, static_argnames=("num_graphs",))
def decoder_forward(x, batch, weight, bias, num_graphs):
    """x: [N, H], batch: [N] int graph ids, weight: [H, H] (PyTorch out x in),
    bias: [H]. Returns [num_graphs, H]."""
    N, H = x.shape
    itemsize = jnp.dtype(x.dtype).itemsize
    B_pad = _round_up(max(num_graphs, 1), 8)
    tile_n, num_tiles, vmem_limit = _choose_tiling(N, H, B_pad, itemsize)
    N_pad = num_tiles * tile_n

    # Only the graph-id vector gets a padded copy (cheap); padded ids are -1 so
    # they never match a graph row.  x streams un-padded straight from HBM.
    batch_p = jnp.full((1, N_pad), -1, dtype=jnp.int32).at[0, :N].set(
        batch.astype(jnp.int32))

    # --- Kernel 1: streaming segment-sum over the node dimension ---------------
    # N is a reduction axis ("arbitrary"): the f32 pooled output block stays
    # VMEM-resident across all grid steps and acts as the accumulator.
    # (Optional on v5e/v6e: pipeline_mode=pl.Buffered(3) on the x spec.)
    pooled = pl.pallas_call(
        functools.partial(_segment_sum_kernel, n_nodes=N),
        out_shape=jax.ShapeDtypeStruct((B_pad, H), jnp.float32),
        grid_spec=pltpu.PrefetchScalarGridSpec(
            num_scalar_prefetch=0,
            grid=(num_tiles,),
            in_specs=[
                pl.BlockSpec((1, tile_n), lambda n: (0, n)),   # graph ids tile
                pl.BlockSpec((tile_n, H), lambda n: (n, 0)),   # x slab (pipelined)
            ],
            out_specs=pl.BlockSpec((B_pad, H), lambda n: (0, 0)),  # accumulator-resident
        ),
        compiler_params=pltpu.CompilerParams(
            dimension_semantics=("arbitrary",),
            vmem_limit_bytes=vmem_limit,
        ),
    )(batch_p, x)

    # --- Kernel 2: Linear(H, H) on the tiny pooled tensor ----------------------
    # Separate call so the weight never competes with the x double-buffer; W is
    # streamed in output-row tiles (double-buffered at tile granularity only).
    tn_out = H if H <= 512 else 512
    n_out_tiles = pl.cdiv(H, tn_out)
    bias2d = bias.astype(jnp.float32).reshape(1, H)

    out_p = pl.pallas_call(
        _linear_kernel,
        out_shape=jax.ShapeDtypeStruct((B_pad, H), x.dtype),
        grid_spec=pltpu.PrefetchScalarGridSpec(
            num_scalar_prefetch=0,
            grid=(n_out_tiles,),
            in_specs=[
                pl.BlockSpec((B_pad, H), lambda j: (0, 0)),    # pooled (resident)
                pl.BlockSpec((tn_out, H), lambda j: (j, 0)),   # W row tile
                pl.BlockSpec((1, tn_out), lambda j: (0, j)),   # bias tile
            ],
            out_specs=pl.BlockSpec((B_pad, tn_out), lambda j: (0, j)),
        ),
        compiler_params=pltpu.CompilerParams(
            dimension_semantics=("parallel",),
        ),
    )(pooled, weight, bias2d)

    return out_p[:num_graphs, :]


if __name__ == "__main__":
    key = jax.random.PRNGKey(0)
    k_x, k_w, k_b = jax.random.split(key, 3)

    N = 8          # total nodes across all graphs
    H = 32         # n_hidden
    B = 2          # number of graphs in the batch

    x = jax.random.normal(k_x, (N, H), dtype=jnp.float32)
    batch = jnp.array([0, 0, 0, 1, 1, 1, 1, 1], dtype=jnp.int32)  # graph id per node

    # nn.Linear(H, H) parameters, deterministic init (uniform(-1/sqrt(H), 1/sqrt(H)))
    bound = 1.0 / jnp.sqrt(jnp.float32(H))
    weight = jax.random.uniform(k_w, (H, H), dtype=jnp.float32, minval=-bound, maxval=bound)
    bias = jax.random.uniform(k_b, (H,), dtype=jnp.float32, minval=-bound, maxval=bound)

    out = decoder_forward(x, batch, weight, bias, num_graphs=B)
    out = jax.block_until_ready(out)

    # Pure-JAX reference: f32 segment sum + HIGHEST-precision linear.
    pooled_ref = jax.ops.segment_sum(x, batch, num_segments=B)
    ref = jnp.dot(pooled_ref, weight.T, precision=jax.lax.Precision.HIGHEST) + bias

    assert out.shape == (B, H)
    assert jnp.allclose(out, ref, atol=1e-5, rtol=1e-4), "mismatch vs reference"

    print("KERNEL_OK")
</pallas_src>

<mosaic_0001>
module attributes {stable_mosaic.version = 11 : i64} {
  func.func @_segment_sum_kernel(%arg0: i32, %arg1: memref<1x8xi32, #tpu.memory_space<vmem>>, %arg2: memref<8x32xf32, #tpu.memory_space<vmem>>, %arg3: memref<8x32xf32, #tpu.memory_space<vmem>>) attributes {dimension_semantics = [#tpu.dimension_semantics<arbitrary>], iteration_bounds = array<i64: 1>, scalar_prefetch = 0 : i64, scratch_operands = 0 : i64, tpu.core_type = #tpu.core_type<tc>, window_params = [{transform_indices = @transform_0, window_bounds = array<i64: 1, 8>}, {transform_indices = @transform_1, window_bounds = array<i64: 8, 32>}, {pipeline_mode = #tpu.pipeline_mode<synchronous>, transform_indices = @transform_2, window_bounds = array<i64: 8, 32>}]} {
    %c0_i32 = arith.constant 0 : i32
    %0 = arith.cmpi eq, %arg0, %c0_i32 : i32
    %1 = arith.extui %0 : i1 to i32
    %c0_i32_0 = arith.constant 0 : i32
    %2 = arith.cmpi ne, %1, %c0_i32_0 : i32
    scf.if %2 {
      %cst_8 = arith.constant 0.000000e+00 : f32
      %14 = vector.broadcast %cst_8 : f32 to vector<8x32xf32>
      %c0_9 = arith.constant 0 : index
      %c0_10 = arith.constant 0 : index
      %15 = vector.load %arg3[%c0_9, %c0_10] : memref<8x32xf32, #tpu.memory_space<vmem>>, vector<8x32xf32>
      tpu.vector_store %arg3[%c0_9, %c0_10], %14 {strides = array<i32>} : memref<8x32xf32, #tpu.memory_space<vmem>>, vector<8x32xf32>,
    } else {
    }
    %c0 = arith.constant 0 : index
    %c0_1 = arith.constant 0 : index
    %3 = vector.load %arg2[%c0, %c0_1] : memref<8x32xf32, #tpu.memory_space<vmem>>, vector<8x32xf32>
    %c0_2 = arith.constant 0 : index
    %c0_3 = arith.constant 0 : index
    %4 = vector.load %arg1[%c0_2, %c0_3] : memref<1x8xi32, #tpu.memory_space<vmem>>, vector<1x8xi32>
    %5 = tpu.iota {dimensions = array<i32: 0>} : vector<8x8xi32>
    %6 = vector.broadcast %4 : vector<1x8xi32> to vector<8x8xi32>
    %7 = arith.cmpi eq, %5, %6 : vector<8x8xi32>
    %8 = arith.extui %7 : vector<8x8xi1> to vector<8x8xi32>
    %9 = arith.sitofp %8 : vector<8x8xi32> to vector<8x8xf32>
    %c0_4 = arith.constant 0 : index
    %c0_5 = arith.constant 0 : index
    %10 = vector.load %arg3[%c0_4, %c0_5] : memref<8x32xf32, #tpu.memory_space<vmem>>, vector<8x32xf32>
    %cst = arith.constant dense<0.000000e+00> : vector<8x32xf32>
    %11 = tpu.matmul %9, %3, %cst {dimension_numbers = #tpu.dot_dimension_numbers<[1], [0], [0], [1], [0, 0, 1, 1], [], []>, precision = #tpu.contract_precision<fp32>} : vector<8x8xf32>, vector<8x32xf32>, vector<8x32xf32> -> vector<8x32xf32>
    %12 = arith.addf %10, %11 : vector<8x32xf32>
    %c0_6 = arith.constant 0 : index
    %c0_7 = arith.constant 0 : index
    %13 = vector.load %arg3[%c0_6, %c0_7] : memref<8x32xf32, #tpu.memory_space<vmem>>, vector<8x32xf32>
    tpu.vector_store %arg3[%c0_6, %c0_7], %12 {strides = array<i32>} : memref<8x32xf32, #tpu.memory_space<vmem>>, vector<8x32xf32>,
    return
  }
  func.func @transform_0(%arg0: i32) -> (i32, i32) {
    %c0_i32 = arith.constant 0 : i32
    %c0_i32_0 = arith.constant 0 : i32
    return %c0_i32, %arg0 : i32, i32
  }
  func.func @transform_1(%arg0: i32) -> (i32, i32) {
    %c0_i32 = arith.constant 0 : i32
    %c0_i32_0 = arith.constant 0 : i32
    return %arg0, %c0_i32 : i32, i32
  }
  func.func @transform_2(%arg0: i32) -> (i32, i32) {
    %c0_i32 = arith.constant 0 : i32
    %c0_i32_0 = arith.constant 0 : i32
    %c0_i32_1 = arith.constant 0 : i32
    return %c0_i32, %c0_i32_0 : i32, i32
  }
}

module attributes {stable_mosaic.version = 11 : i64} {
  func.func @_linear_kernel(%arg0: i32, %arg1: memref<8x32xf32, #tpu.memory_space<vmem>>, %arg2: memref<32x32xf32, #tpu.memory_space<vmem>>, %arg3: memref<1x32xf32, #tpu.memory_space<vmem>>, %arg4: memref<8x32xf32, #tpu.memory_space<vmem>>) attributes {dimension_semantics = [#tpu.dimension_semantics<parallel>], iteration_bounds = array<i64: 1>, scalar_prefetch = 0 : i64, scratch_operands = 0 : i64, tpu.core_type = #tpu.core_type<tc>, window_params = [{pipeline_mode = #tpu.pipeline_mode<synchronous>, transform_indices = @transform_0, window_bounds = array<i64: 8, 32>}, {transform_indices = @transform_1, window_bounds = array<i64: 32, 32>}, {transform_indices = @transform_2, window_bounds = array<i64: 1, 32>}, {transform_indices = @transform_3, window_bounds = array<i64: 8, 32>}]} {
    %c0 = arith.constant 0 : index
    %c0_0 = arith.constant 0 : index
    %0 = vector.load %arg2[%c0, %c0_0] : memref<32x32xf32, #tpu.memory_space<vmem>>, vector<32x32xf32>
    %c0_1 = arith.constant 0 : index
    %c0_2 = arith.constant 0 : index
    %1 = vector.load %arg1[%c0_1, %c0_2] : memref<8x32xf32, #tpu.memory_space<vmem>>, vector<8x32xf32>
    %cst = arith.constant dense<0.000000e+00> : vector<8x32xf32>
    %2 = tpu.matmul %1, %0, %cst {dimension_numbers = #tpu.dot_dimension_numbers<[1], [1], [0], [0], [0, 0, 1, 0], [], []>, precision = #tpu.contract_precision<fp32>} : vector<8x32xf32>, vector<32x32xf32>, vector<8x32xf32> -> vector<8x32xf32>
    %c0_3 = arith.constant 0 : index
    %c0_4 = arith.constant 0 : index
    %3 = vector.load %arg3[%c0_3, %c0_4] : memref<1x32xf32, #tpu.memory_space<vmem>>, vector<1x32xf32>
    %4 = vector.broadcast %3 : vector<1x32xf32> to vector<8x32xf32>
    %5 = arith.addf %2, %4 : vector<8x32xf32>
    %c0_5 = arith.constant 0 : index
    %c0_6 = arith.constant 0 : index
    %6 = vector.load %arg4[%c0_5, %c0_6] : memref<8x32xf32, #tpu.memory_space<vmem>>, vector<8x32xf32>
    tpu.vector_store %arg4[%c0_5, %c0_6], %5 {strides = array<i32>} : memref<8x32xf32, #tpu.memory_space<vmem>>, vector<8x32xf32>,
    return
  }
  func.func @transform_0(%arg0: i32) -> (i32, i32) {
    %c0_i32 = arith.constant 0 : i32
    %c0_i32_0 = arith.constant 0 : i32
    %c0_i32_1 = arith.constant 0 : i32
    return %c0_i32, %c0_i32_0 : i32, i32
  }
  func.func @transform_1(%arg0: i32) -> (i32, i32) {
    %c0_i32 = arith.constant 0 : i32
    %c0_i32_0 = arith.constant 0 : i32
    return %arg0, %c0_i32 : i32, i32
  }
  func.func @transform_2(%arg0: i32) -> (i32, i32) {
    %c0_i32 = arith.constant 0 : i32
    %c0_i32_0 = arith.constant 0 : i32
    return %c0_i32, %arg0 : i32, i32
  }
  func.func @transform_3(%arg0: i32) -> (i32, i32) {
    %c0_i32 = arith.constant 0 : i32
    %c0_i32_0 = arith.constant 0 : i32
    return %c0_i32, %arg0 : i32, i32
  }
}

</mosaic_0001>

<llo_original>
// kernel: decoder_forward.2
$region0: #{decoder_forward.2}
  #allocation0 [shape = 'u32[]', space=smem, size = 0x4, offset = 0x4, fixed_abs, tag = 'smem constant byte address 0x4 - core index']
  #allocation1 [shape = 'u32[144,128]{1,0:T(1,128)}', space=vmem, size = 0x12000, scoped, tag = 'internal scratch']
  %s0 = inlined_call_operand.vmem [shape: s32[1,8], index: 0, kind: input, shape index: {}]
  %s1 = inlined_call_operand.hbm [shape: f32[8,32], index: 1, kind: input, shape index: {}]
  %s2 = inlined_call_operand.vmem [shape: f32[8,32], index: 2, kind: output, shape index: {}]
  %s3 = sld [smem:[#allocation0]]
  $region26: #{decoder_forward.2} parent=0
    _
  %s5 = ssub.s32 1, %s3
  %s6 = scalar_select 0, %s5, %s3
  $region1: #{decoder_forward.2} parent=0
    #allocation2 [shape = 'u8[4096]{0}', space=vmem, size = 0x1000, scoped, tag = 'input window, operand 1, single buffered']
    #allocation3 [shape = 's32[1]{0}', space=sflag, size = 0x4, scoped, tag = 'scoped memory for decoder_forward.2']
    %7 = vsyncpa [#allocation3], 0
    // Predicated region
    $region2: #{decoder_forward.2} parent=1 // pred_check
      _
    $region3: #{decoder_forward.2} parent=1 // pred_check_branch
      %9 = sbr.rel (0) target = $region5
    $region4: #{decoder_forward.2} parent=1 // pred_region
      _
    $region5: #{decoder_forward.2} parent=1 // pred_fallthru
      _
    // Predicated region
    $region6: #{decoder_forward.2} parent=1 // pred_check
      _
    $region7: #{decoder_forward.2} parent=1 // pred_check_branch
      %11 = sbr.rel (0) target = $region9
    $region8: #{decoder_forward.2} parent=1 // pred_region
      %s13 = ssub.s32 128, 128
      %14 = vsyncadd [#allocation3], %s13
      %s16 = sshll.u32 [#allocation2], 4
      %s17 = int_to_ptr.vmem [resolvable:$true] %s16
      %19 = dma.hbm_to_vmem [thread:$0]  %s1, 128, %s17, [#allocation3]
    $region9: #{decoder_forward.2} parent=1 // pred_fallthru
      _
    // Predicated region
    $region10: #{decoder_forward.2} parent=1 // pred_check
      _
    $region11: #{decoder_forward.2} parent=1 // pred_check_branch
      %21 = sbr.rel (0) target = $region13
    $region12: #{decoder_forward.2} parent=1 // pred_region
      %22 = dma.done [#allocation3], 128
    $region13: #{decoder_forward.2} parent=1 // pred_fallthru
      _
    %p23 = scmp.eq.s32.totalorder 0, 0
    // Predicated region
    $region14: #{decoder_forward.2} parent=1 // pred_check
      %p24 = pneg %p23
    $region15: #{decoder_forward.2} parent=1 // pred_check_branch
      %26 = sbr.rel (%p24) target = $region17
    $region16: #{decoder_forward.2} parent=1 // pred_region
      %vm27 = vcmask 261120
      %28 = vst.msk [vmem:[%s2] sm:$0xff] %vm27, 0.0
    $region17: #{decoder_forward.2} parent=1 // pred_fallthru
      _
    %v29 = vld [vmem:[#allocation2] sm:$0xff]
    %v30 = vld [vmem:[%s0] sm:$0x1]
    %v31 = vlaneseq
    %v32 = vshrl.u32 %v31, 7
    %v33 = vlaneseq
    %v34 = vshrl.u32 %v33, 7
    %v35 = vsub.s32 0, %v34
    %v36 = vrot.slane %v30, %v35
    %vm37 = vcmp.eq.s32.totalorder %v32, %v36
    %v38 = vsel %vm37, 1, 0
    %v39 = vcvt.s32.f32 %v38
    %v40 = vld [vmem:[%s2] sm:$0xff]
    %vm41 = vcmask 64512
    %v43 = vsel %vm41, %v39, 0
    %45 = vmatprep.subr.mxu0 0.0
    %46 = vmatpush1.msra.mxu0 0.0
    %47 = vmatprep.subr.mxu0 0.0
    %48 = vmatpush1.msra.mxu0 0.0
    %49 = vmatprep.subr.mxu0 0.0
    %50 = vmatpush1.msra.mxu0 0.0
    %51 = vmatprep.subr.mxu0 0.0
    %52 = vmatpush1.msra.mxu0 0.0
    %53 = vmatprep.subr.mxu0 0.0
    %54 = vmatpush1.msra.mxu0 0.0
    %55 = vmatprep.subr.mxu0 0.0
    %56 = vmatpush1.msra.mxu0 0.0
    %57 = vmatprep.subr.mxu0 0.0
    %58 = vmatpush1.msra.mxu0 0.0
    %59 = vmatprep.subr.mxu0 0.0
    %60 = vmatpush1.msra.mxu0 0.0
    %61 = vmatprep.subr.mxu0 0.0
    %62 = vmatpush1.msra.mxu0 0.0
    %63 = vmatprep.subr.mxu0 0.0
    %64 = vmatpush1.msra.mxu0 0.0
    %65 = vmatprep.subr.mxu0 0.0
    %66 = vmatpush1.msra.mxu0 0.0
    %67 = vmatprep.subr.mxu0 0.0
    %68 = vmatpush1.msra.mxu0 0.0
    %69 = vmatprep.subr.mxu0 0.0
    %70 = vmatpush1.msra.mxu0 0.0
    %71 = vmatprep.subr.mxu0 0.0
    %72 = vmatpush1.msra.mxu0 0.0
    %73 = vmatprep.subr.mxu0 0.0
    %74 = vmatpush1.msra.mxu0 0.0
    %75 = vmatprep.subr.mxu0 0.0
    %v76 = vand.u32 %v29, 4294901760
    %77 = vmatpush1.msra.mxu0 %v76
    %78 = vmatprep.subr.mxu0 0.0
    %79 = vmatpush2.msra.mxu0 0.0
    %80 = vmatprep.subr.mxu0 0.0
    %81 = vmatpush2.msra.mxu0 0.0
    %82 = vmatprep.subr.mxu0 0.0
    %83 = vmatpush2.msra.mxu0 0.0
    %84 = vmatprep.subr.mxu0 0.0
    %85 = vmatpush2.msra.mxu0 0.0
    %86 = vmatprep.subr.mxu0 0.0
    %87 = vmatpush2.msra.mxu0 0.0
    %88 = vmatprep.subr.mxu0 0.0
    %89 = vmatpush2.msra.mxu0 0.0
    %90 = vmatprep.subr.mxu0 0.0
    %91 = vmatpush2.msra.mxu0 0.0
    %92 = vmatprep.subr.mxu0 0.0
    %93 = vmatpush2.msra.mxu0 0.0
    %94 = vmatprep.subr.mxu0 0.0
    %95 = vmatpush2.msra.mxu0 0.0
    %96 = vmatprep.subr.mxu0 0.0
    %97 = vmatpush2.msra.mxu0 0.0
    %98 = vmatprep.subr.mxu0 0.0
    %99 = vmatpush2.msra.mxu0 0.0
    %100 = vmatprep.subr.mxu0 0.0
    %101 = vmatpush2.msra.mxu0 0.0
    %102 = vmatprep.subr.mxu0 0.0
    %103 = vmatpush2.msra.mxu0 0.0
    %104 = vmatprep.subr.mxu0 0.0
    %105 = vmatpush2.msra.mxu0 0.0
    %106 = vmatprep.subr.mxu0 0.0
    %107 = vmatpush2.msra.mxu0 0.0
    %108 = vmatprep.subr.mxu0 0.0
    %109 = vmatpush2.msra.mxu0 0.0
    %110 = vmatprep.mubr.f32.mxu0 0.0
    %v111 = vand.u32 %v43, 4294901760
    %v112 = vsub.f32 %v43, %v111
    %v113 = vand.u32 %v112, 4294901760
    %v114 = vsub.f32 %v112, %v113
    %v115 = vand.u32 %v114, 4294901760
    %116 = vmatmul.mubr.f32.gmra.mxu0 %v115
    %v117 = vpop.f32.mrf.mxu0
    %v118 = vadd.f32 0.0, %v117
    %v119 = vpop.f32.mrf.mxu0
    %120 = vdwg.mxu0
    %121 = vmatprep.subr.mxu0 0.0
    %122 = vmatpush1.msra.mxu0 0.0
    %123 = vmatprep.subr.mxu0 0.0
    %124 = vmatpush1.msra.mxu0 0.0
    %125 = vmatprep.subr.mxu0 0.0
    %126 = vmatpush1.msra.mxu0 0.0
    %127 = vmatprep.subr.mxu0 0.0
    %128 = vmatpush1.msra.mxu0 0.0
    %129 = vmatprep.subr.mxu0 0.0
    %130 = vmatpush1.msra.mxu0 0.0
    %131 = vmatprep.subr.mxu0 0.0
    %132 = vmatpush1.msra.mxu0 0.0
    %133 = vmatprep.subr.mxu0 0.0
    %134 = vmatpush1.msra.mxu0 0.0
    %135 = vmatprep.subr.mxu0 0.0
    %136 = vmatpush1.msra.mxu0 0.0
    %137 = vmatprep.subr.mxu0 0.0
    %138 = vmatpush1.msra.mxu0 0.0
    %139 = vmatprep.subr.mxu0 0.0
    %140 = vmatpush1.msra.mxu0 0.0
    %141 = vmatprep.subr.mxu0 0.0
    %142 = vmatpush1.msra.mxu0 0.0
    %143 = vmatprep.subr.mxu0 0.0
    %144 = vmatpush1.msra.mxu0 0.0
    %145 = vmatprep.subr.mxu0 0.0
    %146 = vmatpush1.msra.mxu0 0.0
    %147 = vmatprep.subr.mxu0 0.0
    %148 = vmatpush1.msra.mxu0 0.0
    %149 = vmatprep.subr.mxu0 0.0
    %150 = vmatpush1.msra.mxu0 0.0
    %151 = vmatprep.subr.mxu0 0.0
    %v152 = vand.u32 %v29, 4294901760
    %v153 = vsub.f32 %v29, %v152
    %v154 = vand.u32 %v153, 4294901760
    %v155 = vsub.f32 %v153, %v154
    %v156 = vand.u32 %v155, 4294901760
    %157 = vmatpush1.msra.mxu0 %v156
    %158 = vmatprep.subr.mxu0 0.0
    %159 = vmatpush2.msra.mxu0 0.0
    %160 = vmatprep.subr.mxu0 0.0
    %161 = vmatpush2.msra.mxu0 0.0
    %162 = vmatprep.subr.mxu0 0.0
    %163 = vmatpush2.msra.mxu0 0.0
    %164 = vmatprep.subr.mxu0 0.0
    %165 = vmatpush2.msra.mxu0 0.0
    %166 = vmatprep.subr.mxu0 0.0
    %167 = vmatpush2.msra.mxu0 0.0
    %168 = vmatprep.subr.mxu0 0.0
    %169 = vmatpush2.msra.mxu0 0.0
    %170 = vmatprep.subr.mxu0 0.0
    %171 = vmatpush2.msra.mxu0 0.0
    %172 = vmatprep.subr.mxu0 0.0
    %173 = vmatpush2.msra.mxu0 0.0
    %174 = vmatprep.subr.mxu0 0.0
    %175 = vmatpush2.msra.mxu0 0.0
    %176 = vmatprep.subr.mxu0 0.0
    %177 = vmatpush2.msra.mxu0 0.0
    %178 = vmatprep.subr.mxu0 0.0
    %179 = vmatpush2.msra.mxu0 0.0
    %180 = vmatprep.subr.mxu0 0.0
    %181 = vmatpush2.msra.mxu0 0.0
    %182 = vmatprep.subr.mxu0 0.0
    %183 = vmatpush2.msra.mxu0 0.0
    %184 = vmatprep.subr.mxu0 0.0
    %185 = vmatpush2.msra.mxu0 0.0
    %186 = vmatprep.subr.mxu0 0.0
    %187 = vmatpush2.msra.mxu0 0.0
    %188 = vmatprep.subr.mxu0 0.0
    %189 = vmatpush2.msra.mxu0 0.0
    %190 = vmatprep.mubr.f32.mxu0 0.0
    %v191 = vand.u32 %v43, 4294901760
    %192 = vmatmul.mubr.f32.gmra.mxu0 %v191
    %v193 = vpop.f32.mrf.mxu0
    %v194 = vadd.f32 %v118, %v193
    %v195 = vpop.f32.mrf.mxu0
    %196 = vdwg.mxu0
    %197 = vmatprep.subr.mxu0 0.0
    %198 = vmatpush1.msra.mxu0 0.0
    %199 = vmatprep.subr.mxu0 0.0
    %200 = vmatpush1.msra.mxu0 0.0
    %201 = vmatprep.subr.mxu0 0.0
    %202 = vmatpush1.msra.mxu0 0.0
    %203 = vmatprep.subr.mxu0 0.0
    %204 = vmatpush1.msra.mxu0 0.0
    %205 = vmatprep.subr.mxu0 0.0
    %206 = vmatpush1.msra.mxu0 0.0
    %207 = vmatprep.subr.mxu0 0.0
    %208 = vmatpush1.msra.mxu0 0.0
    %209 = vmatprep.subr.mxu0 0.0
    %210 = vmatpush1.msra.mxu0 0.0
    %211 = vmatprep.subr.mxu0 0.0
    %212 = vmatpush1.msra.mxu0 0.0
    %213 = vmatprep.subr.mxu0 0.0
    %214 = vmatpush1.msra.mxu0 0.0
    %215 = vmatprep.subr.mxu0 0.0
    %216 = vmatpush1.msra.mxu0 0.0
    %217 = vmatprep.subr.mxu0 0.0
    %218 = vmatpush1.msra.mxu0 0.0
    %219 = vmatprep.subr.mxu0 0.0
    %220 = vmatpush1.msra.mxu0 0.0
    %221 = vmatprep.subr.mxu0 0.0
    %222 = vmatpush1.msra.mxu0 0.0
    %223 = vmatprep.subr.mxu0 0.0
    %224 = vmatpush1.msra.mxu0 0.0
    %225 = vmatprep.subr.mxu0 0.0
    %226 = vmatpush1.msra.mxu0 0.0
    %227 = vmatprep.subr.mxu0 0.0
    %v228 = vand.u32 %v29, 4294901760
    %v229 = vsub.f32 %v29, %v228
    %230 = vmatpush1.msra.mxu0 %v229
    %231 = vmatprep.subr.mxu0 0.0
    %232 = vmatpush2.msra.mxu0 0.0
    %233 = vmatprep.subr.mxu0 0.0
    %234 = vmatpush2.msra.mxu0 0.0
    %235 = vmatprep.subr.mxu0 0.0
    %236 = vmatpush2.msra.mxu0 0.0
    %237 = vmatprep.subr.mxu0 0.0
    %238 = vmatpush2.msra.mxu0 0.0
    %239 = vmatprep.subr.mxu0 0.0
    %240 = vmatpush2.msra.mxu0 0.0
    %241 = vmatprep.subr.mxu0 0.0
    %242 = vmatpush2.msra.mxu0 0.0
    %243 = vmatprep.subr.mxu0 0.0
    %244 = vmatpush2.msra.mxu0 0.0
    %245 = vmatprep.subr.mxu0 0.0
    %246 = vmatpush2.msra.mxu0 0.0
    %247 = vmatprep.subr.mxu0 0.0
    %248 = vmatpush2.msra.mxu0 0.0
    %249 = vmatprep.subr.mxu0 0.0
    %250 = vmatpush2.msra.mxu0 0.0
    %251 = vmatprep.subr.mxu0 0.0
    %252 = vmatpush2.msra.mxu0 0.0
    %253 = vmatprep.subr.mxu0 0.0
    %254 = vmatpush2.msra.mxu0 0.0
    %255 = vmatprep.subr.mxu0 0.0
    %256 = vmatpush2.msra.mxu0 0.0
    %257 = vmatprep.subr.mxu0 0.0
    %258 = vmatpush2.msra.mxu0 0.0
    %259 = vmatprep.subr.mxu0 0.0
    %260 = vmatpush2.msra.mxu0 0.0
    %261 = vmatprep.subr.mxu0 0.0
    %262 = vmatpush2.msra.mxu0 0.0
    %263 = vmatprep.mubr.f32.mxu0 0.0
    %v264 = vand.u32 %v43, 4294901760
    %v265 = vsub.f32 %v43, %v264
    %266 = vmatmul.mubr.f32.gmra.mxu0 %v265
    %v267 = vpop.f32.mrf.mxu0
    %v268 = vadd.f32 %v194, %v267
    %v269 = vpop.f32.mrf.mxu0
    %270 = vdwg.mxu0
    %271 = vmatprep.subr.mxu0 0.0
    %272 = vmatpush1.msra.mxu0 0.0
    %273 = vmatprep.subr.mxu0 0.0
    %274 = vmatpush1.msra.mxu0 0.0
    %275 = vmatprep.subr.mxu0 0.0
    %276 = vmatpush1.msra.mxu0 0.0
    %277 = vmatprep.subr.mxu0 0.0
    %278 = vmatpush1.msra.mxu0 0.0
    %279 = vmatprep.subr.mxu0 0.0
    %280 = vmatpush1.msra.mxu0 0.0
    %281 = vmatprep.subr.mxu0 0.0
    %282 = vmatpush1.msra.mxu0 0.0
    %283 = vmatprep.subr.mxu0 0.0
    %284 = vmatpush1.msra.mxu0 0.0
    %285 = vmatprep.subr.mxu0 0.0
    %286 = vmatpush1.msra.mxu0 0.0
    %287 = vmatprep.subr.mxu0 0.0
    %288 = vmatpush1.msra.mxu0 0.0
    %289 = vmatprep.subr.mxu0 0.0
    %290 = vmatpush1.msra.mxu0 0.0
    %291 = vmatprep.subr.mxu0 0.0
    %292 = vmatpush1.msra.mxu0 0.0
    %293 = vmatprep.subr.mxu0 0.0
    %294 = vmatpush1.msra.mxu0 0.0
    %295 = vmatprep.subr.mxu0 0.0
    %296 = vmatpush1.msra.mxu0 0.0
    %297 = vmatprep.subr.mxu0 0.0
    %298 = vmatpush1.msra.mxu0 0.0
    %299 = vmatprep.subr.mxu0 0.0
    %300 = vmatpush1.msra.mxu0 0.0
    %301 = vmatprep.subr.mxu0 0.0
    %v302 = vand.u32 %v29, 4294901760
    %303 = vmatpush1.msra.mxu0 %v302
    %304 = vmatprep.subr.mxu0 0.0
    %305 = vmatpush2.msra.mxu0 0.0
    %306 = vmatprep.subr.mxu0 0.0
    %307 = vmatpush2.msra.mxu0 0.0
    %308 = vmatprep.subr.mxu0 0.0
    %309 = vmatpush2.msra.mxu0 0.0
    %310 = vmatprep.subr.mxu0 0.0
    %311 = vmatpush2.msra.mxu0 0.0
    %312 = vmatprep.subr.mxu0 0.0
    %313 = vmatpush2.msra.mxu0 0.0
    %314 = vmatprep.subr.mxu0 0.0
    %315 = vmatpush2.msra.mxu0 0.0
    %316 = vmatprep.subr.mxu0 0.0
    %317 = vmatpush2.msra.mxu0 0.0
    %318 = vmatprep.subr.mxu0 0.0
    %319 = vmatpush2.msra.mxu0 0.0
    %320 = vmatprep.subr.mxu0 0.0
    %321 = vmatpush2.msra.mxu0 0.0
    %322 = vmatprep.subr.mxu0 0.0
    %323 = vmatpush2.msra.mxu0 0.0
    %324 = vmatprep.subr.mxu0 0.0
    %325 = vmatpush2.msra.mxu0 0.0
    %326 = vmatprep.subr.mxu0 0.0
    %327 = vmatpush2.msra.mxu0 0.0
    %328 = vmatprep.subr.mxu0 0.0
    %329 = vmatpush2.msra.mxu0 0.0
    %330 = vmatprep.subr.mxu0 0.0
    %331 = vmatpush2.msra.mxu0 0.0
    %332 = vmatprep.subr.mxu0 0.0
    %333 = vmatpush2.msra.mxu0 0.0
    %334 = vmatprep.subr.mxu0 0.0
    %335 = vmatpush2.msra.mxu0 0.0
    %336 = vmatprep.mubr.f32.mxu0 0.0
    %v337 = vand.u32 %v43, 4294901760
    %v338 = vsub.f32 %v43, %v337
    %v339 = vand.u32 %v338, 4294901760
    %340 = vmatmul.mubr.f32.gmra.mxu0 %v339
    %v341 = vpop.f32.mrf.mxu0
    %v342 = vadd.f32 %v268, %v341
    %v343 = vpop.f32.mrf.mxu0
    %344 = vdwg.mxu0
    %345 = vmatprep.subr.mxu0 0.0
    %346 = vmatpush1.msra.mxu0 0.0
    %347 = vmatprep.subr.mxu0 0.0
    %348 = vmatpush1.msra.mxu0 0.0
    %349 = vmatprep.subr.mxu0 0.0
    %350 = vmatpush1.msra.mxu0 0.0
    %351 = vmatprep.subr.mxu0 0.0
    %352 = vmatpush1.msra.mxu0 0.0
    %353 = vmatprep.subr.mxu0 0.0
    %354 = vmatpush1.msra.mxu0 0.0
    %355 = vmatprep.subr.mxu0 0.0
    %356 = vmatpush1.msra.mxu0 0.0
    %357 = vmatprep.subr.mxu0 0.0
    %358 = vmatpush1.msra.mxu0 0.0
    %359 = vmatprep.subr.mxu0 0.0
    %360 = vmatpush1.msra.mxu0 0.0
    %361 = vmatprep.subr.mxu0 0.0
    %362 = vmatpush1.msra.mxu0 0.0
    %363 = vmatprep.subr.mxu0 0.0
    %364 = vmatpush1.msra.mxu0 0.0
    %365 = vmatprep.subr.mxu0 0.0
    %366 = vmatpush1.msra.mxu0 0.0
    %367 = vmatprep.subr.mxu0 0.0
    %368 = vmatpush1.msra.mxu0 0.0
    %369 = vmatprep.subr.mxu0 0.0
    %370 = vmatpush1.msra.mxu0 0.0
    %371 = vmatprep.subr.mxu0 0.0
    %372 = vmatpush1.msra.mxu0 0.0
    %373 = vmatprep.subr.mxu0 0.0
    %374 = vmatpush1.msra.mxu0 0.0
    %375 = vmatprep.subr.mxu0 0.0
    %v376 = vand.u32 %v29, 4294901760
    %v377 = vsub.f32 %v29, %v376
    %v378 = vand.u32 %v377, 4294901760
    %379 = vmatpush1.msra.mxu0 %v378
    %380 = vmatprep.subr.mxu0 0.0
    %381 = vmatpush2.msra.mxu0 0.0
    %382 = vmatprep.subr.mxu0 0.0
    %383 = vmatpush2.msra.mxu0 0.0
    %384 = vmatprep.subr.mxu0 0.0
    %385 = vmatpush2.msra.mxu0 0.0
    %386 = vmatprep.subr.mxu0 0.0
    %387 = vmatpush2.msra.mxu0 0.0
    %388 = vmatprep.subr.mxu0 0.0
    %389 = vmatpush2.msra.mxu0 0.0
    %390 = vmatprep.subr.mxu0 0.0
    %391 = vmatpush2.msra.mxu0 0.0
    %392 = vmatprep.subr.mxu0 0.0
    %393 = vmatpush2.msra.mxu0 0.0
    %394 = vmatprep.subr.mxu0 0.0
    %395 = vmatpush2.msra.mxu0 0.0
    %396 = vmatprep.subr.mxu0 0.0
    %397 = vmatpush2.msra.mxu0 0.0
    %398 = vmatprep.subr.mxu0 0.0
    %399 = vmatpush2.msra.mxu0 0.0
    %400 = vmatprep.subr.mxu0 0.0
    %401 = vmatpush2.msra.mxu0 0.0
    %402 = vmatprep.subr.mxu0 0.0
    %403 = vmatpush2.msra.mxu0 0.0
    %404 = vmatprep.subr.mxu0 0.0
    %405 = vmatpush2.msra.mxu0 0.0
    %406 = vmatprep.subr.mxu0 0.0
    %407 = vmatpush2.msra.mxu0 0.0
    %408 = vmatprep.subr.mxu0 0.0
    %409 = vmatpush2.msra.mxu0 0.0
    %410 = vmatprep.subr.mxu0 0.0
    %411 = vmatpush2.msra.mxu0 0.0
    %412 = vmatprep.mubr.f32.mxu0 0.0
    %v413 = vand.u32 %v43, 4294901760
    %414 = vmatmul.mubr.f32.gmra.mxu0 %v413
    %v415 = vpop.f32.mrf.mxu0
    %v416 = vadd.f32 %v342, %v415
    %v417 = vpop.f32.mrf.mxu0
    %418 = vdwg.mxu0
    %419 = vmatprep.subr.mxu0 0.0
    %420 = vmatpush1.msra.mxu0 0.0
    %421 = vmatprep.subr.mxu0 0.0
    %422 = vmatpush1.msra.mxu0 0.0
    %423 = vmatprep.subr.mxu0 0.0
    %424 = vmatpush1.msra.mxu0 0.0
    %425 = vmatprep.subr.mxu0 0.0
    %426 = vmatpush1.msra.mxu0 0.0
    %427 = vmatprep.subr.mxu0 0.0
    %428 = vmatpush1.msra.mxu0 0.0
    %429 = vmatprep.subr.mxu0 0.0
    %430 = vmatpush1.msra.mxu0 0.0
    %431 = vmatprep.subr.mxu0 0.0
    %432 = vmatpush1.msra.mxu0 0.0
    %433 = vmatprep.subr.mxu0 0.0
    %434 = vmatpush1.msra.mxu0 0.0
    %435 = vmatprep.subr.mxu0 0.0
    %436 = vmatpush1.msra.mxu0 0.0
    %437 = vmatprep.subr.mxu0 0.0
    %438 = vmatpush1.msra.mxu0 0.0
    %439 = vmatprep.subr.mxu0 0.0
    %440 = vmatpush1.msra.mxu0 0.0
    %441 = vmatprep.subr.mxu0 0.0
    %442 = vmatpush1.msra.mxu0 0.0
    %443 = vmatprep.subr.mxu0 0.0
    %444 = vmatpush1.msra.mxu0 0.0
    %445 = vmatprep.subr.mxu0 0.0
    %446 = vmatpush1.msra.mxu0 0.0
    %447 = vmatprep.subr.mxu0 0.0
    %448 = vmatpush1.msra.mxu0 0.0
    %449 = vmatprep.subr.mxu0 0.0
    %v450 = vand.u32 %v29, 4294901760
    %451 = vmatpush1.msra.mxu0 %v450
    %452 = vmatprep.subr.mxu0 0.0
    %453 = vmatpush2.msra.mxu0 0.0
    %454 = vmatprep.subr.mxu0 0.0
    %455 = vmatpush2.msra.mxu0 0.0
    %456 = vmatprep.subr.mxu0 0.0
    %457 = vmatpush2.msra.mxu0 0.0
    %458 = vmatprep.subr.mxu0 0.0
    %459 = vmatpush2.msra.mxu0 0.0
    %460 = vmatprep.subr.mxu0 0.0
    %461 = vmatpush2.msra.mxu0 0.0
    %462 = vmatprep.subr.mxu0 0.0
    %463 = vmatpush2.msra.mxu0 0.0
    %464 = vmatprep.subr.mxu0 0.0
    %465 = vmatpush2.msra.mxu0 0.0
    %466 = vmatprep.subr.mxu0 0.0
    %467 = vmatpush2.msra.mxu0 0.0
    %468 = vmatprep.subr.mxu0 0.0
    %469 = vmatpush2.msra.mxu0 0.0
    %470 = vmatprep.subr.mxu0 0.0
    %471 = vmatpush2.msra.mxu0 0.0
    %472 = vmatprep.subr.mxu0 0.0
    %473 = vmatpush2.msra.mxu0 0.0
    %474 = vmatprep.subr.mxu0 0.0
    %475 = vmatpush2.msra.mxu0 0.0
    %476 = vmatprep.subr.mxu0 0.0
    %477 = vmatpush2.msra.mxu0 0.0
    %478 = vmatprep.subr.mxu0 0.0
    %479 = vmatpush2.msra.mxu0 0.0
    %480 = vmatprep.subr.mxu0 0.0
    %481 = vmatpush2.msra.mxu0 0.0
    %482 = vmatprep.subr.mxu0 0.0
    %483 = vmatpush2.msra.mxu0 0.0
    %484 = vmatprep.mubr.f32.mxu0 0.0
    %v485 = vand.u32 %v43, 4294901760
    %486 = vmatmul.mubr.f32.gmra.mxu0 %v485
    %v487 = vpop.f32.mrf.mxu0
    %v488 = vadd.f32 %v416, %v487
    %v489 = vpop.f32.mrf.mxu0
    %490 = vdwg.mxu0
    %v491 = vadd.f32 %v40, %v488
    %vm492 = vcmask 261120
    %493 = vst.msk [vmem:[%s2] sm:$0xff] %vm492, %v491
    // Predicated region
    $region18: #{decoder_forward.2} parent=1 // pred_check
      _
    $region19: #{decoder_forward.2} parent=1 // pred_check_branch
      %495 = sbr.rel (0) target = $region21
    $region20: #{decoder_forward.2} parent=1 // pred_region
      _
    $region21: #{decoder_forward.2} parent=1 // pred_fallthru
      _
    // Predicated region
    $region22: #{decoder_forward.2} parent=1 // pred_check
      _
    $region23: #{decoder_forward.2} parent=1 // pred_check_branch
      %497 = sbr.rel (0) target = $region25
    $region24: #{decoder_forward.2} parent=1 // pred_region
      _
    $region25: #{decoder_forward.2} parent=1 // pred_fallthru
      _
    %498 = vsyncpa [#allocation3], 1

// kernel: decoder_forward.3
$region0: #{decoder_forward.3}
  #allocation0 [shape = 'u32[]', space=smem, size = 0x4, offset = 0x4, fixed_abs, tag = 'smem constant byte address 0x4 - core index']
  #allocation1 [shape = 'u32[144,128]{1,0:T(1,128)}', space=vmem, size = 0x12000, scoped, tag = 'internal scratch']
  %s0 = inlined_call_operand.vmem [shape: f32[8,32], index: 0, kind: input, shape index: {}]
  %s1 = inlined_call_operand.hbm [shape: f32[32,32], index: 1, kind: input, shape index: {}]
  %s2 = inlined_call_operand.vmem [shape: f32[1,32], index: 2, kind: input, shape index: {}]
  %s3 = inlined_call_operand.vmem [shape: f32[8,32], index: 3, kind: output, shape index: {}]
  %s4 = sld [smem:[#allocation0]]
  $region26: #{decoder_forward.3} parent=0
    _
  %s6 = ssub.s32 1, %s4
  %s7 = scalar_select 0, %s6, %s4
  $region1: #{decoder_forward.3} parent=0
    #allocation2 [shape = 'u8[16384]{0}', space=vmem, size = 0x4000, scoped, tag = 'input window, operand 1, single buffered']
    #allocation3 [shape = 's32[1]{0}', space=sflag, size = 0x4, scoped, tag = 'scoped memory for decoder_forward.3']
    %8 = vsyncpa [#allocation3], 0
    // Predicated region
    $region2: #{decoder_forward.3} parent=1 // pred_check
      _
    $region3: #{decoder_forward.3} parent=1 // pred_check_branch
      %10 = sbr.rel (0) target = $region5
    $region4: #{decoder_forward.3} parent=1 // pred_region
      _
    $region5: #{decoder_forward.3} parent=1 // pred_fallthru
      _
    // Predicated region
    $region6: #{decoder_forward.3} parent=1 // pred_check
      _
    $region7: #{decoder_forward.3} parent=1 // pred_check_branch
      %12 = sbr.rel (0) target = $region9
    $region8: #{decoder_forward.3} parent=1 // pred_region
      %s14 = ssub.s32 512, 512
      %15 = vsyncadd [#allocation3], %s14
      %s16 = sshll.u32 [#allocation2], 4
      %s17 = int_to_ptr.vmem [resolvable:$true] %s16
      %22 = dma.hbm_to_vmem [thread:$0]  %s1, 512, %s17, [#allocation3], 128, 128, 8
    $region9: #{decoder_forward.3} parent=1 // pred_fallthru
      _
    // Predicated region
    $region10: #{decoder_forward.3} parent=1 // pred_check
      _
    $region11: #{decoder_forward.3} parent=1 // pred_check_branch
      %24 = sbr.rel (0) target = $region13
    $region12: #{decoder_forward.3} parent=1 // pred_region
      _
    $region13: #{decoder_forward.3} parent=1 // pred_fallthru
      _
    // Predicated region
    $region14: #{decoder_forward.3} parent=1 // pred_check
      _
    $region15: #{decoder_forward.3} parent=1 // pred_check_branch
      %26 = sbr.rel (0) target = $region17
    $region16: #{decoder_forward.3} parent=1 // pred_region
      %27 = dma.done [#allocation3], 512
    $region17: #{decoder_forward.3} parent=1 // pred_fallthru
      _
    %v28 = vld [vmem:[#allocation2] sm:$0xff]
    %v29 = vld [vmem:[#allocation2 + $0x8] sm:$0xff]
    %v30 = vld [vmem:[#allocation2 + $0x10] sm:$0xff]
    %v31 = vld [vmem:[#allocation2 + $0x18] sm:$0xff]
    %v32 = vld [vmem:[%s0] sm:$0xff]
    %v33 = vld [vmem:[%s2] sm:$0x1]
    %v35 = vlaneseq
    %v36 = vshrl.u32 %v35, 7
    %v37 = vsub.s32 0, %v36
    %v38 = vrot.slane %v33, %v37
    %vm40 = vcmask 261120
    %v42 = vsel %vm40, %v32, 0
    %v45 = vsel %vm40, %v28, 0
    %v48 = vsel %vm40, %v29, 0
    %v51 = vsel %vm40, %v30, 0
    %v54 = vsel %vm40, %v31, 0
    %56 = vmatprep.subr.mxu0 0.0
    %57 = vmatpush1.xpose.msra.mxu0 0.0
    %58 = vmatprep.subr.mxu0 0.0
    %59 = vmatpush1.xpose.msra.mxu0 0.0
    %60 = vmatprep.subr.mxu0 0.0
    %61 = vmatpush1.xpose.msra.mxu0 0.0
    %62 = vmatprep.subr.mxu0 0.0
    %63 = vmatpush1.xpose.msra.mxu0 0.0
    %64 = vmatprep.subr.mxu0 0.0
    %65 = vmatpush1.xpose.msra.mxu0 0.0
    %66 = vmatprep.subr.mxu0 0.0
    %67 = vmatpush1.xpose.msra.mxu0 0.0
    %68 = vmatprep.subr.mxu0 0.0
    %69 = vmatpush1.xpose.msra.mxu0 0.0
    %70 = vmatprep.subr.mxu0 0.0
    %71 = vmatpush1.xpose.msra.mxu0 0.0
    %72 = vmatprep.subr.mxu0 0.0
    %73 = vmatpush1.xpose.msra.mxu0 0.0
    %74 = vmatprep.subr.mxu0 0.0
    %75 = vmatpush1.xpose.msra.mxu0 0.0
    %76 = vmatprep.subr.mxu0 0.0
    %77 = vmatpush1.xpose.msra.mxu0 0.0
    %78 = vmatprep.subr.mxu0 0.0
    %79 = vmatpush1.xpose.msra.mxu0 0.0
    %80 = vmatprep.subr.mxu0 0.0
    %v81 = vand.u32 %v54, 4294901760
    %82 = vmatpush1.xpose.msra.mxu0 %v81
    %83 = vmatprep.subr.mxu0 0.0
    %v84 = vand.u32 %v51, 4294901760
    %85 = vmatpush1.xpose.msra.mxu0 %v84
    %86 = vmatprep.subr.mxu0 0.0
    %v87 = vand.u32 %v48, 4294901760
    %88 = vmatpush1.xpose.msra.mxu0 %v87
    %89 = vmatprep.subr.mxu0 0.0
    %v90 = vand.u32 %v45, 4294901760
    %91 = vmatpush1.xpose.msra.mxu0 %v90
    %92 = vmatprep.subr.mxu0 0.0
    %93 = vmatpush2.xpose.msra.mxu0 0.0
    %94 = vmatprep.subr.mxu0 0.0
    %95 = vmatpush2.xpose.msra.mxu0 0.0
    %96 = vmatprep.subr.mxu0 0.0
    %97 = vmatpush2.xpose.msra.mxu0 0.0
    %98 = vmatprep.subr.mxu0 0.0
    %99 = vmatpush2.xpose.msra.mxu0 0.0
    %100 = vmatprep.subr.mxu0 0.0
    %101 = vmatpush2.xpose.msra.mxu0 0.0
    %102 = vmatprep.subr.mxu0 0.0
    %103 = vmatpush2.xpose.msra.mxu0 0.0
    %104 = vmatprep.subr.mxu0 0.0
    %105 = vmatpush2.xpose.msra.mxu0 0.0
    %106 = vmatprep.subr.mxu0 0.0
    %107 = vmatpush2.xpose.msra.mxu0 0.0
    %108 = vmatprep.subr.mxu0 0.0
    %109 = vmatpush2.xpose.msra.mxu0 0.0
    %110 = vmatprep.subr.mxu0 0.0
    %111 = vmatpush2.xpose.msra.mxu0 0.0
    %112 = vmatprep.subr.mxu0 0.0
    %113 = vmatpush2.xpose.msra.mxu0 0.0
    %114 = vmatprep.subr.mxu0 0.0
    %115 = vmatpush2.xpose.msra.mxu0 0.0
    %116 = vmatprep.subr.mxu0 0.0
    %117 = vmatpush2.xpose.msra.mxu0 0.0
    %118 = vmatprep.subr.mxu0 0.0
    %119 = vmatpush2.xpose.msra.mxu0 0.0
    %120 = vmatprep.subr.mxu0 0.0
    %121 = vmatpush2.xpose.msra.mxu0 0.0
    %122 = vmatprep.subr.mxu0 0.0
    %123 = vmatpush2.xpose.msra.mxu0 0.0
    %124 = vmatprep.mubr.f32.mxu0 0.0
    %v125 = vand.u32 %v42, 4294901760
    %v126 = vsub.f32 %v42, %v125
    %v127 = vand.u32 %v126, 4294901760
    %v128 = vsub.f32 %v126, %v127
    %v129 = vand.u32 %v128, 4294901760
    %130 = vmatmul.mubr.f32.gmra.mxu0 %v129
    %v131 = vpop.f32.mrf.mxu0
    %v132 = vadd.f32 %v38, %v131
    %v133 = vpop.f32.mrf.mxu0
    %134 = vdwg.mxu0
    %135 = vmatprep.subr.mxu0 0.0
    %136 = vmatpush1.xpose.msra.mxu0 0.0
    %137 = vmatprep.subr.mxu0 0.0
    %138 = vmatpush1.xpose.msra.mxu0 0.0
    %139 = vmatprep.subr.mxu0 0.0
    %140 = vmatpush1.xpose.msra.mxu0 0.0
    %141 = vmatprep.subr.mxu0 0.0
    %142 = vmatpush1.xpose.msra.mxu0 0.0
    %143 = vmatprep.subr.mxu0 0.0
    %144 = vmatpush1.xpose.msra.mxu0 0.0
    %145 = vmatprep.subr.mxu0 0.0
    %146 = vmatpush1.xpose.msra.mxu0 0.0
    %147 = vmatprep.subr.mxu0 0.0
    %148 = vmatpush1.xpose.msra.mxu0 0.0
    %149 = vmatprep.subr.mxu0 0.0
    %150 = vmatpush1.xpose.msra.mxu0 0.0
    %151 = vmatprep.subr.mxu0 0.0
    %152 = vmatpush1.xpose.msra.mxu0 0.0
    %153 = vmatprep.subr.mxu0 0.0
    %154 = vmatpush1.xpose.msra.mxu0 0.0
    %155 = vmatprep.subr.mxu0 0.0
    %156 = vmatpush1.xpose.msra.mxu0 0.0
    %157 = vmatprep.subr.mxu0 0.0
    %158 = vmatpush1.xpose.msra.mxu0 0.0
    %159 = vmatprep.subr.mxu0 0.0
    %v160 = vand.u32 %v54, 4294901760
    %v161 = vsub.f32 %v54, %v160
    %v162 = vand.u32 %v161, 4294901760
    %v163 = vsub.f32 %v161, %v162
    %v164 = vand.u32 %v163, 4294901760
    %165 = vmatpush1.xpose.msra.mxu0 %v164
    %166 = vmatprep.subr.mxu0 0.0
    %v167 = vand.u32 %v51, 4294901760
    %v168 = vsub.f32 %v51, %v167
    %v169 = vand.u32 %v168, 4294901760
    %v170 = vsub.f32 %v168, %v169
    %v171 = vand.u32 %v170, 4294901760
    %172 = vmatpush1.xpose.msra.mxu0 %v171
    %173 = vmatprep.subr.mxu0 0.0
    %v174 = vand.u32 %v48, 4294901760
    %v175 = vsub.f32 %v48, %v174
    %v176 = vand.u32 %v175, 4294901760
    %v177 = vsub.f32 %v175, %v176
    %v178 = vand.u32 %v177, 4294901760
    %179 = vmatpush1.xpose.msra.mxu0 %v178
    %180 = vmatprep.subr.mxu0 0.0
    %v181 = vand.u32 %v45, 4294901760
    %v182 = vsub.f32 %v45, %v181
    %v183 = vand.u32 %v182, 4294901760
    %v184 = vsub.f32 %v182, %v183
    %v185 = vand.u32 %v184, 4294901760
    %186 = vmatpush1.xpose.msra.mxu0 %v185
    %187 = vmatprep.subr.mxu0 0.0
    %188 = vmatpush2.xpose.msra.mxu0 0.0
    %189 = vmatprep.subr.mxu0 0.0
    %190 = vmatpush2.xpose.msra.mxu0 0.0
    %191 = vmatprep.subr.mxu0 0.0
    %192 = vmatpush2.xpose.msra.mxu0 0.0
    %193 = vmatprep.subr.mxu0 0.0
    %194 = vmatpush2.xpose.msra.mxu0 0.0
    %195 = vmatprep.subr.mxu0 0.0
    %196 = vmatpush2.xpose.msra.mxu0 0.0
    %197 = vmatprep.subr.mxu0 0.0
    %198 = vmatpush2.xpose.msra.mxu0 0.0
    %199 = vmatprep.subr.mxu0 0.0
    %200 = vmatpush2.xpose.msra.mxu0 0.0
    %201 = vmatprep.subr.mxu0 0.0
    %202 = vmatpush2.xpose.msra.mxu0 0.0
    %203 = vmatprep.subr.mxu0 0.0
    %204 = vmatpush2.xpose.msra.mxu0 0.0
    %205 = vmatprep.subr.mxu0 0.0
    %206 = vmatpush2.xpose.msra.mxu0 0.0
    %207 = vmatprep.subr.mxu0 0.0
    %208 = vmatpush2.xpose.msra.mxu0 0.0
    %209 = vmatprep.subr.mxu0 0.0
    %210 = vmatpush2.xpose.msra.mxu0 0.0
    %211 = vmatprep.subr.mxu0 0.0
    %212 = vmatpush2.xpose.msra.mxu0 0.0
    %213 = vmatprep.subr.mxu0 0.0
    %214 = vmatpush2.xpose.msra.mxu0 0.0
    %215 = vmatprep.subr.mxu0 0.0
    %216 = vmatpush2.xpose.msra.mxu0 0.0
    %217 = vmatprep.subr.mxu0 0.0
    %218 = vmatpush2.xpose.msra.mxu0 0.0
    %219 = vmatprep.mubr.f32.mxu0 0.0
    %v220 = vand.u32 %v42, 4294901760
    %221 = vmatmul.mubr.f32.gmra.mxu0 %v220
    %v222 = vpop.f32.mrf.mxu0
    %v223 = vadd.f32 %v132, %v222
    %v224 = vpop.f32.mrf.mxu0
    %225 = vdwg.mxu0
    %226 = vmatprep.subr.mxu0 0.0
    %227 = vmatpush1.xpose.msra.mxu0 0.0
    %228 = vmatprep.subr.mxu0 0.0
    %229 = vmatpush1.xpose.msra.mxu0 0.0
    %230 = vmatprep.subr.mxu0 0.0
    %231 = vmatpush1.xpose.msra.mxu0 0.0
    %232 = vmatprep.subr.mxu0 0.0
    %233 = vmatpush1.xpose.msra.mxu0 0.0
    %234 = vmatprep.subr.mxu0 0.0
    %235 = vmatpush1.xpose.msra.mxu0 0.0
    %236 = vmatprep.subr.mxu0 0.0
    %237 = vmatpush1.xpose.msra.mxu0 0.0
    %238 = vmatprep.subr.mxu0 0.0
    %239 = vmatpush1.xpose.msra.mxu0 0.0
    %240 = vmatprep.subr.mxu0 0.0
    %241 = vmatpush1.xpose.msra.mxu0 0.0
    %242 = vmatprep.subr.mxu0 0.0
    %243 = vmatpush1.xpose.msra.mxu0 0.0
    %244 = vmatprep.subr.mxu0 0.0
    %245 = vmatpush1.xpose.msra.mxu0 0.0
    %246 = vmatprep.subr.mxu0 0.0
    %247 = vmatpush1.xpose.msra.mxu0 0.0
    %248 = vmatprep.subr.mxu0 0.0
    %249 = vmatpush1.xpose.msra.mxu0 0.0
    %250 = vmatprep.subr.mxu0 0.0
    %v251 = vand.u32 %v54, 4294901760
    %v252 = vsub.f32 %v54, %v251
    %253 = vmatpush1.xpose.msra.mxu0 %v252
    %254 = vmatprep.subr.mxu0 0.0
    %v255 = vand.u32 %v51, 4294901760
    %v256 = vsub.f32 %v51, %v255
    %257 = vmatpush1.xpose.msra.mxu0 %v256
    %258 = vmatprep.subr.mxu0 0.0
    %v259 = vand.u32 %v48, 4294901760
    %v260 = vsub.f32 %v48, %v259
    %261 = vmatpush1.xpose.msra.mxu0 %v260
    %262 = vmatprep.subr.mxu0 0.0
    %v263 = vand.u32 %v45, 4294901760
    %v264 = vsub.f32 %v45, %v263
    %265 = vmatpush1.xpose.msra.mxu0 %v264
    %266 = vmatprep.subr.mxu0 0.0
    %267 = vmatpush2.xpose.msra.mxu0 0.0
    %268 = vmatprep.subr.mxu0 0.0
    %269 = vmatpush2.xpose.msra.mxu0 0.0
    %270 = vmatprep.subr.mxu0 0.0
    %271 = vmatpush2.xpose.msra.mxu0 0.0
    %272 = vmatprep.subr.mxu0 0.0
    %273 = vmatpush2.xpose.msra.mxu0 0.0
    %274 = vmatprep.subr.mxu0 0.0
    %275 = vmatpush2.xpose.msra.mxu0 0.0
    %276 = vmatprep.subr.mxu0 0.0
    %277 = vmatpush2.xpose.msra.mxu0 0.0
    %278 = vmatprep.subr.mxu0 0.0
    %279 = vmatpush2.xpose.msra.mxu0 0.0
    %280 = vmatprep.subr.mxu0 0.0
    %281 = vmatpush2.xpose.msra.mxu0 0.0
    %282 = vmatprep.subr.mxu0 0.0
    %283 = vmatpush2.xpose.msra.mxu0 0.0
    %284 = vmatprep.subr.mxu0 0.0
    %285 = vmatpush2.xpose.msra.mxu0 0.0
    %286 = vmatprep.subr.mxu0 0.0
    %287 = vmatpush2.xpose.msra.mxu0 0.0
    %288 = vmatprep.subr.mxu0 0.0
    %289 = vmatpush2.xpose.msra.mxu0 0.0
    %290 = vmatprep.subr.mxu0 0.0
    %291 = vmatpush2.xpose.msra.mxu0 0.0
    %292 = vmatprep.subr.mxu0 0.0
    %293 = vmatpush2.xpose.msra.mxu0 0.0
    %294 = vmatprep.subr.mxu0 0.0
    %295 = vmatpush2.xpose.msra.mxu0 0.0
    %296 = vmatprep.subr.mxu0 0.0
    %297 = vmatpush2.xpose.msra.mxu0 0.0
    %298 = vmatprep.mubr.f32.mxu0 0.0
    %v299 = vand.u32 %v42, 4294901760
    %v300 = vsub.f32 %v42, %v299
    %301 = vmatmul.mubr.f32.gmra.mxu0 %v300
    %v302 = vpop.f32.mrf.mxu0
    %v303 = vadd.f32 %v223, %v302
    %v304 = vpop.f32.mrf.mxu0
    %305 = vdwg.mxu0
    %306 = vmatprep.subr.mxu0 0.0
    %307 = vmatpush1.xpose.msra.mxu0 0.0
    %308 = vmatprep.subr.mxu0 0.0
    %309 = vmatpush1.xpose.msra.mxu0 0.0
    %310 = vmatprep.subr.mxu0 0.0
    %311 = vmatpush1.xpose.msra.mxu0 0.0
    %312 = vmatprep.subr.mxu0 0.0
    %313 = vmatpush1.xpose.msra.mxu0 0.0
    %314 = vmatprep.subr.mxu0 0.0
    %315 = vmatpush1.xpose.msra.mxu0 0.0
    %316 = vmatprep.subr.mxu0 0.0
    %317 = vmatpush1.xpose.msra.mxu0 0.0
    %318 = vmatprep.subr.mxu0 0.0
    %319 = vmatpush1.xpose.msra.mxu0 0.0
    %320 = vmatprep.subr.mxu0 0.0
    %321 = vmatpush1.xpose.msra.mxu0 0.0
    %322 = vmatprep.subr.mxu0 0.0
    %323 = vmatpush1.xpose.msra.mxu0 0.0
    %324 = vmatprep.subr.mxu0 0.0
    %325 = vmatpush1.xpose.msra.mxu0 0.0
    %326 = vmatprep.subr.mxu0 0.0
    %327 = vmatpush1.xpose.msra.mxu0 0.0
    %328 = vmatprep.subr.mxu0 0.0
    %329 = vmatpush1.xpose.msra.mxu0 0.0
    %330 = vmatprep.subr.mxu0 0.0
    %v331 = vand.u32 %v54, 4294901760
    %332 = vmatpush1.xpose.msra.mxu0 %v331
    %333 = vmatprep.subr.mxu0 0.0
    %v334 = vand.u32 %v51, 4294901760
    %335 = vmatpush1.xpose.msra.mxu0 %v334
    %336 = vmatprep.subr.mxu0 0.0
    %v337 = vand.u32 %v48, 4294901760
    %338 = vmatpush1.xpose.msra.mxu0 %v337
    %339 = vmatprep.subr.mxu0 0.0
    %v340 = vand.u32 %v45, 4294901760
    %341 = vmatpush1.xpose.msra.mxu0 %v340
    %342 = vmatprep.subr.mxu0 0.0
    %343 = vmatpush2.xpose.msra.mxu0 0.0
    %344 = vmatprep.subr.mxu0 0.0
    %345 = vmatpush2.xpose.msra.mxu0 0.0
    %346 = vmatprep.subr.mxu0 0.0
    %347 = vmatpush2.xpose.msra.mxu0 0.0
    %348 = vmatprep.subr.mxu0 0.0
    %349 = vmatpush2.xpose.msra.mxu0 0.0
    %350 = vmatprep.subr.mxu0 0.0
    %351 = vmatpush2.xpose.msra.mxu0 0.0
    %352 = vmatprep.subr.mxu0 0.0
    %353 = vmatpush2.xpose.msra.mxu0 0.0
    %354 = vmatprep.subr.mxu0 0.0
    %355 = vmatpush2.xpose.msra.mxu0 0.0
    %356 = vmatprep.subr.mxu0 0.0
    %357 = vmatpush2.xpose.msra.mxu0 0.0
    %358 = vmatprep.subr.mxu0 0.0
    %359 = vmatpush2.xpose.msra.mxu0 0.0
    %360 = vmatprep.subr.mxu0 0.0
    %361 = vmatpush2.xpose.msra.mxu0 0.0
    %362 = vmatprep.subr.mxu0 0.0
    %363 = vmatpush2.xpose.msra.mxu0 0.0
    %364 = vmatprep.subr.mxu0 0.0
    %365 = vmatpush2.xpose.msra.mxu0 0.0
    %366 = vmatprep.subr.mxu0 0.0
    %367 = vmatpush2.xpose.msra.mxu0 0.0
    %368 = vmatprep.subr.mxu0 0.0
    %369 = vmatpush2.xpose.msra.mxu0 0.0
    %370 = vmatprep.subr.mxu0 0.0
    %371 = vmatpush2.xpose.msra.mxu0 0.0
    %372 = vmatprep.subr.mxu0 0.0
    %373 = vmatpush2.xpose.msra.mxu0 0.0
    %374 = vmatprep.mubr.f32.mxu0 0.0
    %v375 = vand.u32 %v42, 4294901760
    %v376 = vsub.f32 %v42, %v375
    %v377 = vand.u32 %v376, 4294901760
    %378 = vmatmul.mubr.f32.gmra.mxu0 %v377
    %v379 = vpop.f32.mrf.mxu0
    %v380 = vadd.f32 %v303, %v379
    %v381 = vpop.f32.mrf.mxu0
    %382 = vdwg.mxu0
    %383 = vmatprep.subr.mxu0 0.0
    %384 = vmatpush1.xpose.msra.mxu0 0.0
    %385 = vmatprep.subr.mxu0 0.0
    %386 = vmatpush1.xpose.msra.mxu0 0.0
    %387 = vmatprep.subr.mxu0 0.0
    %388 = vmatpush1.xpose.msra.mxu0 0.0
    %389 = vmatprep.subr.mxu0 0.0
    %390 = vmatpush1.xpose.msra.mxu0 0.0
    %391 = vmatprep.subr.mxu0 0.0
    %392 = vmatpush1.xpose.msra.mxu0 0.0
    %393 = vmatprep.subr.mxu0 0.0
    %394 = vmatpush1.xpose.msra.mxu0 0.0
    %395 = vmatprep.subr.mxu0 0.0
    %396 = vmatpush1.xpose.msra.mxu0 0.0
    %397 = vmatprep.subr.mxu0 0.0
    %398 = vmatpush1.xpose.msra.mxu0 0.0
    %399 = vmatprep.subr.mxu0 0.0
    %400 = vmatpush1.xpose.msra.mxu0 0.0
    %401 = vmatprep.subr.mxu0 0.0
    %402 = vmatpush1.xpose.msra.mxu0 0.0
    %403 = vmatprep.subr.mxu0 0.0
    %404 = vmatpush1.xpose.msra.mxu0 0.0
    %405 = vmatprep.subr.mxu0 0.0
    %406 = vmatpush1.xpose.msra.mxu0 0.0
    %407 = vmatprep.subr.mxu0 0.0
    %v408 = vand.u32 %v54, 4294901760
    %v409 = vsub.f32 %v54, %v408
    %v410 = vand.u32 %v409, 4294901760
    %411 = vmatpush1.xpose.msra.mxu0 %v410
    %412 = vmatprep.subr.mxu0 0.0
    %v413 = vand.u32 %v51, 4294901760
    %v414 = vsub.f32 %v51, %v413
    %v415 = vand.u32 %v414, 4294901760
    %416 = vmatpush1.xpose.msra.mxu0 %v415
    %417 = vmatprep.subr.mxu0 0.0
    %v418 = vand.u32 %v48, 4294901760
    %v419 = vsub.f32 %v48, %v418
    %v420 = vand.u32 %v419, 4294901760
    %421 = vmatpush1.xpose.msra.mxu0 %v420
    %422 = vmatprep.subr.mxu0 0.0
    %v423 = vand.u32 %v45, 4294901760
    %v424 = vsub.f32 %v45, %v423
    %v425 = vand.u32 %v424, 4294901760
    %426 = vmatpush1.xpose.msra.mxu0 %v425
    %427 = vmatprep.subr.mxu0 0.0
    %428 = vmatpush2.xpose.msra.mxu0 0.0
    %429 = vmatprep.subr.mxu0 0.0
    %430 = vmatpush2.xpose.msra.mxu0 0.0
    %431 = vmatprep.subr.mxu0 0.0
    %432 = vmatpush2.xpose.msra.mxu0 0.0
    %433 = vmatprep.subr.mxu0 0.0
    %434 = vmatpush2.xpose.msra.mxu0 0.0
    %435 = vmatprep.subr.mxu0 0.0
    %436 = vmatpush2.xpose.msra.mxu0 0.0
    %437 = vmatprep.subr.mxu0 0.0
    %438 = vmatpush2.xpose.msra.mxu0 0.0
    %439 = vmatprep.subr.mxu0 0.0
    %440 = vmatpush2.xpose.msra.mxu0 0.0
    %441 = vmatprep.subr.mxu0 0.0
    %442 = vmatpush2.xpose.msra.mxu0 0.0
    %443 = vmatprep.subr.mxu0 0.0
    %444 = vmatpush2.xpose.msra.mxu0 0.0
    %445 = vmatprep.subr.mxu0 0.0
    %446 = vmatpush2.xpose.msra.mxu0 0.0
    %447 = vmatprep.subr.mxu0 0.0
    %448 = vmatpush2.xpose.msra.mxu0 0.0
    %449 = vmatprep.subr.mxu0 0.0
    %450 = vmatpush2.xpose.msra.mxu0 0.0
    %451 = vmatprep.subr.mxu0 0.0
    %452 = vmatpush2.xpose.msra.mxu0 0.0
    %453 = vmatprep.subr.mxu0 0.0
    %454 = vmatpush2.xpose.msra.mxu0 0.0
    %455 = vmatprep.subr.mxu0 0.0
    %456 = vmatpush2.xpose.msra.mxu0 0.0
    %457 = vmatprep.subr.mxu0 0.0
    %458 = vmatpush2.xpose.msra.mxu0 0.0
    %459 = vmatprep.mubr.f32.mxu0 0.0
    %v460 = vand.u32 %v42, 4294901760
    %461 = vmatmul.mubr.f32.gmra.mxu0 %v460
    %v462 = vpop.f32.mrf.mxu0
    %v463 = vadd.f32 %v380, %v462
    %v464 = vpop.f32.mrf.mxu0
    %465 = vdwg.mxu0
    %466 = vmatprep.subr.mxu0 0.0
    %467 = vmatpush1.xpose.msra.mxu0 0.0
    %468 = vmatprep.subr.mxu0 0.0
    %469 = vmatpush1.xpose.msra.mxu0 0.0
    %470 = vmatprep.subr.mxu0 0.0
    %471 = vmatpush1.xpose.msra.mxu0 0.0
    %472 = vmatprep.subr.mxu0 0.0
    %473 = vmatpush1.xpose.msra.mxu0 0.0
    %474 = vmatprep.subr.mxu0 0.0
    %475 = vmatpush1.xpose.msra.mxu0 0.0
    %476 = vmatprep.subr.mxu0 0.0
    %477 = vmatpush1.xpose.msra.mxu0 0.0
    %478 = vmatprep.subr.mxu0 0.0
    %479 = vmatpush1.xpose.msra.mxu0 0.0
    %480 = vmatprep.subr.mxu0 0.0
    %481 = vmatpush1.xpose.msra.mxu0 0.0
    %482 = vmatprep.subr.mxu0 0.0
    %483 = vmatpush1.xpose.msra.mxu0 0.0
    %484 = vmatprep.subr.mxu0 0.0
    %485 = vmatpush1.xpose.msra.mxu0 0.0
    %486 = vmatprep.subr.mxu0 0.0
    %487 = vmatpush1.xpose.msra.mxu0 0.0
    %488 = vmatprep.subr.mxu0 0.0
    %489 = vmatpush1.xpose.msra.mxu0 0.0
    %490 = vmatprep.subr.mxu0 0.0
    %v491 = vand.u32 %v54, 4294901760
    %492 = vmatpush1.xpose.msra.mxu0 %v491
    %493 = vmatprep.subr.mxu0 0.0
    %v494 = vand.u32 %v51, 4294901760
    %495 = vmatpush1.xpose.msra.mxu0 %v494
    %496 = vmatprep.subr.mxu0 0.0
    %v497 = vand.u32 %v48, 4294901760
    %498 = vmatpush1.xpose.msra.mxu0 %v497
    %499 = vmatprep.subr.mxu0 0.0
    %v500 = vand.u32 %v45, 4294901760
    %501 = vmatpush1.xpose.msra.mxu0 %v500
    %502 = vmatprep.subr.mxu0 0.0
    %503 = vmatpush2.xpose.msra.mxu0 0.0
    %504 = vmatprep.subr.mxu0 0.0
    %505 = vmatpush2.xpose.msra.mxu0 0.0
    %506 = vmatprep.subr.mxu0 0.0
    %507 = vmatpush2.xpose.msra.mxu0 0.0
    %508 = vmatprep.subr.mxu0 0.0
    %509 = vmatpush2.xpose.msra.mxu0 0.0
    %510 = vmatprep.subr.mxu0 0.0
    %511 = vmatpush2.xpose.msra.mxu0 0.0
    %512 = vmatprep.subr.mxu0 0.0
    %513 = vmatpush2.xpose.msra.mxu0 0.0
    %514 = vmatprep.subr.mxu0 0.0
    %515 = vmatpush2.xpose.msra.mxu0 0.0
    %516 = vmatprep.subr.mxu0 0.0
    %517 = vmatpush2.xpose.msra.mxu0 0.0
    %518 = vmatprep.subr.mxu0 0.0
    %519 = vmatpush2.xpose.msra.mxu0 0.0
    %520 = vmatprep.subr.mxu0 0.0
    %521 = vmatpush2.xpose.msra.mxu0 0.0
    %522 = vmatprep.subr.mxu0 0.0
    %523 = vmatpush2.xpose.msra.mxu0 0.0
    %524 = vmatprep.subr.mxu0 0.0
    %525 = vmatpush2.xpose.msra.mxu0 0.0
    %526 = vmatprep.subr.mxu0 0.0
    %527 = vmatpush2.xpose.msra.mxu0 0.0
    %528 = vmatprep.subr.mxu0 0.0
    %529 = vmatpush2.xpose.msra.mxu0 0.0
    %530 = vmatprep.subr.mxu0 0.0
    %531 = vmatpush2.xpose.msra.mxu0 0.0
    %532 = vmatprep.subr.mxu0 0.0
    %533 = vmatpush2.xpose.msra.mxu0 0.0
    %534 = vmatprep.mubr.f32.mxu0 0.0
    %v535 = vand.u32 %v42, 4294901760
    %536 = vmatmul.mubr.f32.gmra.mxu0 %v535
    %v537 = vpop.f32.mrf.mxu0
    %v538 = vadd.f32 %v463, %v537
    %v539 = vpop.f32.mrf.mxu0
    %540 = vdwg.mxu0
    %541 = vst.msk [vmem:[%s3] sm:$0xff] %vm40, %v538
    // Predicated region
    $region18: #{decoder_forward.3} parent=1 // pred_check
      _
    $region19: #{decoder_forward.3} parent=1 // pred_check_branch
      %543 = sbr.rel (0) target = $region21
    $region20: #{decoder_forward.3} parent=1 // pred_region
      _
    $region21: #{decoder_forward.3} parent=1 // pred_fallthru
      _
    // Predicated region
    $region22: #{decoder_forward.3} parent=1 // pred_check
      _
    $region23: #{decoder_forward.3} parent=1 // pred_check_branch
      %545 = sbr.rel (0) target = $region25
    $region24: #{decoder_forward.3} parent=1 // pred_region
      _
    $region25: #{decoder_forward.3} parent=1 // pred_fallthru
      _
    %546 = vsyncpa [#allocation3], 1

</llo_original>
